<compile_context>
chip_gen: v6e
topology: v6e:2x2x1
jax: 0.10.0
libtpu: 0.0.40
codegen_flags: <defaults>
</compile_context>

<pallas_src>
import functools
import math

import numpy as np
import jax
import jax.numpy as jnp
from jax.experimental import pallas as pl
from jax.experimental.pallas import tpu as pltpu

LANE = 128


def _round_up(x, m):
    return (x + m - 1) // m * m


def _vmem_limit_bytes():
    """Generation-aware VMEM limit: ~75% of physical (~96 MiB v5e/v6e, ~48 MiB v7x)."""
    default = 48 * 1024 * 1024
    try:
        info = pltpu.get_tpu_info()
        cap = getattr(info, "vmem_capacity_bytes", None)
        if cap:
            return int(cap) * 3 // 4
    except Exception:
        pass
    return default


# ---------------------------------------------------------------------------
# Kernel 1: Z = X @ [Wl | Wr] + [0 | bl]   (row-tiled, lane-dense output)
# ---------------------------------------------------------------------------
def _xw_bias_kernel(x_ref, w_ref, b_ref, z_ref):
    z = jnp.dot(x_ref[...], w_ref[...], preferred_element_type=jnp.float32)
    z_ref[...] = (z + b_ref[...]).astype(z_ref.dtype)


def xw_bias(x, wcat, bcat, *, tz, vmem_limit):
    n, c_in = x.shape
    c2 = wcat.shape[1]
    return pl.pallas_call(
        _xw_bias_kernel,
        out_shape=jax.ShapeDtypeStruct((n, c2), jnp.bfloat16),
        grid=(n // tz,),
        in_specs=[
            pl.BlockSpec((tz, c_in), lambda i: (i, 0)),
            pl.BlockSpec((c_in, c2), lambda i: (0, 0)),
            pl.BlockSpec((1, c2), lambda i: (0, 0)),
        ],
        out_specs=pl.BlockSpec((tz, c2), lambda i: (i, 0)),
        compiler_params=pltpu.CompilerParams(
            dimension_semantics=("parallel",),
            vmem_limit_bytes=vmem_limit),
    )(x, wcat, bcat)


# ---------------------------------------------------------------------------
# Kernel 2: out = act(A @ Zl + Zr) over a compacted (nonzero-tile) k schedule
# ---------------------------------------------------------------------------
def _agg_combine_kernel(ktbl_ref, kcnt_ref, a_ref, zl_ref, zr_ref, o_ref,
                        acc_ref, *, activation, c_out_valid):
    i = pl.program_id(0)
    k = pl.program_id(1)

    @pl.when(k == 0)
    def _():
        # Fold the accumulator init into the first product (saves one full
        # (tm, c_out) f32 store+load per row tile).  For row blocks with no
        # nonzero A tile at all the fetched tile is all-zero, so the dot
        # contributes nothing.  Zr already carries the lin_l bias folded in.
        acc_ref[...] = zr_ref[...].astype(jnp.float32) + jnp.dot(
            a_ref[...], zl_ref[...], preferred_element_type=jnp.float32)

    @pl.when(jnp.logical_and(k > 0, k < kcnt_ref[i]))
    def _():
        acc_ref[...] += jnp.dot(a_ref[...], zl_ref[...],
                                preferred_element_type=jnp.float32)

    @pl.when(k == pl.num_programs(1) - 1)
    def _():
        out = acc_ref[...]
        if activation == "relu":
            out = jnp.maximum(out, 0.0)
        elif activation == "log_softmax":
            lane = jax.lax.broadcasted_iota(jnp.int32, out.shape, 1)
            out = jnp.where(lane < c_out_valid, out, -1e30)  # mask padded lanes
            m = jnp.max(out, axis=-1, keepdims=True)
            shifted = out - m
            lse = jnp.log(jnp.sum(jnp.exp(shifted), axis=-1, keepdims=True))
            out = shifted - lse
        o_ref[...] = out.astype(o_ref.dtype)


def agg_combine(ktbl, kcnt, a, z, *, c_out_p, activation, c_out_valid,
                out_dtype, tm, tk, kmax, vmem_limit):
    n = a.shape[0]
    n_i = n // tm
    kernel = functools.partial(_agg_combine_kernel, activation=activation,
                               c_out_valid=c_out_valid)

    # Data-dependent index maps over the compacted k axis (scalar-prefetch
    # refs arrive as positional trailing args).
    def a_map(i, k, tbl, cnt):
        return (i, tbl[i * kmax + k])

    def zl_map(i, k, tbl, cnt):
        return (tbl[i * kmax + k], 0)

    def zr_map(i, k, tbl, cnt):
        return (i, 1)

    def o_map(i, k, tbl, cnt):
        return (i, 0)

    grid_spec = pltpu.PrefetchScalarGridSpec(
        num_scalar_prefetch=2,
        grid=(n_i, kmax),
        in_specs=[
            pl.BlockSpec((tm, tk), a_map),            # A tile (only nonzero blocks)
            pl.BlockSpec((tk, c_out_p), zl_map),      # Zl (left half of Z)
            pl.BlockSpec((tm, c_out_p), zr_map),      # Zr (right half of Z)
        ],
        out_specs=pl.BlockSpec((tm, c_out_p), o_map),
        scratch_shapes=[pltpu.VMEM((tm, c_out_p), jnp.float32)],
    )
    return pl.pallas_call(
        kernel,
        out_shape=jax.ShapeDtypeStruct((n, c_out_p), out_dtype),
        grid_spec=grid_spec,
        compiler_params=pltpu.CompilerParams(
            dimension_semantics=("parallel", "arbitrary"),
            vmem_limit_bytes=vmem_limit),
    )(ktbl, kcnt, a, z, z)


# ---------------------------------------------------------------------------
# Plain-JAX / numpy glue: adjacency, tile schedule, params, padding
# ---------------------------------------------------------------------------
def build_mean_adj(edge_index, num_nodes):
    """Dense mean-aggregation matrix ([2, E]: row 0 = src, row 1 = dst)."""
    src = edge_index[0]
    dst = edge_index[1]
    a = jnp.zeros((num_nodes, num_nodes), jnp.float32).at[dst, src].add(1.0)
    deg = jnp.sum(a, axis=1, keepdims=True)
    return a / jnp.where(deg > 0, deg, 1.0)   # isolated nodes aggregate to 0


def build_tile_schedule(a_pad_f32, tm, tk):
    """Compacted per-row-tile list of nonzero (tm, tk) column blocks of A.

    Returns (flat table [n_i*kmax] int32, counts [n_i] int32, kmax).  Padded
    entries repeat the last valid block index so Pallas elides the redundant
    DMA; their compute is skipped in-kernel via the count.
    """
    n = a_pad_f32.shape[0]
    n_i, n_k = n // tm, n // tk
    occ = np.asarray(a_pad_f32 != 0.0).reshape(n_i, tm, n_k, tk).any(axis=(1, 3))
    counts = occ.sum(axis=1).astype(np.int32)
    kmax = max(int(counts.max()), 1)
    tbl = np.zeros((n_i, kmax), np.int32)
    for i in range(n_i):
        nz = np.nonzero(occ[i])[0]
        if nz.size:
            tbl[i, :nz.size] = nz
            tbl[i, nz.size:] = nz[-1]
    return jnp.asarray(tbl.reshape(-1)), jnp.asarray(counts), kmax


def init_sage_params(key, in_channels, hidden_channels, out_channels, num_layers):
    """Glorot-uniform init matching SAGEConv parameter shapes.

    Per layer: W_l [C_in, C_out] (with bias b_l [C_out]), W_r [C_in, C_out] (no bias).
    """
    dims = [in_channels] + [hidden_channels] * (num_layers - 1) + [out_channels]
    params = []
    for l in range(num_layers):
        c_in, c_out = dims[l], dims[l + 1]
        key, k1, k2 = jax.random.split(key, 3)
        limit = (6.0 / (c_in + c_out)) ** 0.5
        wl = jax.random.uniform(k1, (c_in, c_out), jnp.float32, -limit, limit)
        wr = jax.random.uniform(k2, (c_in, c_out), jnp.float32, -limit, limit)
        bl = jnp.zeros((c_out,), jnp.float32)
        params.append((wl, bl, wr))
    return params


def prepare_params(params):
    """Pad channel dims to multiples of 128, concat [Wl | Wr], fold bias into Zr half."""
    prepared = []
    for wl, bl, wr in params:
        c_in, c_out = wl.shape
        c_in_p = _round_up(c_in, LANE)
        c_out_p = _round_up(c_out, LANE)
        wl_p = jnp.zeros((c_in_p, c_out_p), jnp.float32).at[:c_in, :c_out].set(wl)
        wr_p = jnp.zeros((c_in_p, c_out_p), jnp.float32).at[:c_in, :c_out].set(wr)
        wcat = jnp.concatenate([wl_p, wr_p], axis=1).astype(jnp.bfloat16)
        bcat = jnp.zeros((1, 2 * c_out_p), jnp.float32)
        bcat = bcat.at[0, c_out_p:c_out_p + c_out].set(bl)
        prepared.append((wcat, bcat, c_out, c_out_p))
    return prepared


def sage_forward(params, x, edge_index, *, tm=1024, tk=2048):
    """Eval-mode SAGE forward: [SAGEConv -> ReLU (-> dropout=id)]* -> SAGEConv -> log_softmax."""
    num_nodes, c_in = x.shape
    c_in_p = _round_up(c_in, LANE)
    vmem_limit = _vmem_limit_bytes()

    # Tile sizing: clamp to problem size; keep >= 2 row blocks when possible so
    # the "parallel" row axis covers both v7x TensorCores; round n_pad so both
    # tm and tk divide it.
    n_al = _round_up(num_nodes, LANE)
    tm = max(LANE, min(tm, n_al))
    tk = max(LANE, min(tk, n_al))
    if n_al // tm < 2 and tm > LANE and (tm // 2) % LANE == 0:
        tm //= 2
    n_pad = _round_up(num_nodes, math.lcm(tm, tk))

    a = build_mean_adj(edge_index, num_nodes)
    a_pad_f32 = jnp.zeros((n_pad, n_pad), jnp.float32).at[:num_nodes, :num_nodes].set(a)
    ktbl, kcnt, kmax = build_tile_schedule(a_pad_f32, tm, tk)
    a_pad = a_pad_f32.astype(jnp.bfloat16)
    # TODO(synk): on v7x an fp8 (e4m3) A stream would halve the binding HBM
    # traffic; not enabled here pending accuracy validation of 1/deg in e4m3.

    h = jnp.zeros((n_pad, c_in_p), jnp.bfloat16)
    h = h.at[:num_nodes, :c_in].set(x.astype(jnp.bfloat16))

    prepared = prepare_params(params)
    n_layers = len(prepared)
    for i, (wcat, bcat, c_out, c_out_p) in enumerate(prepared):
        last = i == n_layers - 1
        z = xw_bias(h, wcat, bcat, tz=tm, vmem_limit=vmem_limit)   # [n_pad, 2*c_out_p] bf16
        h = agg_combine(ktbl, kcnt, a_pad, z,
                        c_out_p=c_out_p,
                        activation="log_softmax" if last else "relu",
                        c_out_valid=c_out,
                        out_dtype=jnp.float32 if last else jnp.bfloat16,
                        tm=tm, tk=tk, kmax=kmax, vmem_limit=vmem_limit)
        # F.dropout(p=0.5, training=self.training): identity in eval mode.
        # TODO(synk): training-mode dropout not implemented (would use pltpu.prng_random_bits).

    c_out_final = prepared[-1][2]
    return h[:num_nodes, :c_out_final]


def sage_reference(params, x, edge_index):
    """Plain-JAX f32 reference for correctness checking."""
    a = build_mean_adj(edge_index, x.shape[0])
    h = x
    n_layers = len(params)
    for i, (wl, bl, wr) in enumerate(params):
        agg = a @ h
        out = agg @ wl + bl[None, :] + h @ wr
        h = jnp.maximum(out, 0.0) if i < n_layers - 1 else jax.nn.log_softmax(out, axis=-1)
    return h


if __name__ == "__main__":
    key = jax.random.PRNGKey(0)
    k_x, k_d0, k_s0, k_d1, k_s1, k_params = jax.random.split(key, 6)

    num_nodes = 256
    in_channels = 128
    hidden_channels = 128
    out_channels = 8
    num_layers = 2
    num_edges = 1024

    x = jax.random.normal(k_x, (num_nodes, in_channels), jnp.float32)
    # Block-structured random graph so the tile-skipping path is exercised:
    # row block 0 (nodes 0..127) receives edges only from column block 0,
    # row block 1 receives edges from both column blocks.
    dst0 = jax.random.randint(k_d0, (num_edges // 2,), 0, 128, jnp.int32)
    src0 = jax.random.randint(k_s0, (num_edges // 2,), 0, 128, jnp.int32)
    dst1 = jax.random.randint(k_d1, (num_edges // 2,), 128, 256, jnp.int32)
    src1 = jax.random.randint(k_s1, (num_edges // 2,), 0, 256, jnp.int32)
    edge_index = jnp.stack([jnp.concatenate([src0, src1]),
                            jnp.concatenate([dst0, dst1])], axis=0)

    params = init_sage_params(k_params, in_channels, hidden_channels,
                              out_channels, num_layers)

    # Small explicit tiles so the toy size still exercises a 2x2 block grid,
    # the k-reduction accumulator and the compacted / skipped k schedule.
    out = sage_forward(params, x, edge_index, tm=128, tk=128)
    out = jax.block_until_ready(out)

    assert out.shape == (num_nodes, out_channels)
    # log_softmax rows must exp-sum to ~1
    row_sums = jnp.sum(jnp.exp(out), axis=-1)
    assert bool(jnp.all(jnp.abs(row_sums - 1.0) < 1e-3))

    # Compare against f32 reference (bf16 MXU inputs -> small deviations).
    ref = sage_reference(params, x, edge_index)
    max_err = float(jnp.max(jnp.abs(out - ref)))
    assert max_err < 0.1, f"max abs error vs reference: {max_err}"
    print("KERNEL_OK")
</pallas_src>

<mosaic_0001>
module attributes {stable_mosaic.version = 11 : i64} {
  func.func @_xw_bias_kernel(%arg0: i32, %arg1: memref<128x128xbf16, #tpu.memory_space<vmem>>, %arg2: memref<128x256xbf16, #tpu.memory_space<vmem>>, %arg3: memref<1x256xf32, #tpu.memory_space<vmem>>, %arg4: memref<128x256xbf16, #tpu.memory_space<vmem>>) attributes {dimension_semantics = [#tpu.dimension_semantics<parallel>], iteration_bounds = array<i64: 2>, scalar_prefetch = 0 : i64, scratch_operands = 0 : i64, tpu.core_type = #tpu.core_type<tc>, window_params = [{transform_indices = @transform_0, window_bounds = array<i64: 128, 128>}, {pipeline_mode = #tpu.pipeline_mode<synchronous>, transform_indices = @transform_1, window_bounds = array<i64: 128, 256>}, {pipeline_mode = #tpu.pipeline_mode<synchronous>, transform_indices = @transform_2, window_bounds = array<i64: 1, 256>}, {transform_indices = @transform_3, window_bounds = array<i64: 128, 256>}]} {
    %c0 = arith.constant 0 : index
    %c0_0 = arith.constant 0 : index
    %0 = vector.load %arg1[%c0, %c0_0] : memref<128x128xbf16, #tpu.memory_space<vmem>>, vector<128x128xbf16>
    %c0_1 = arith.constant 0 : index
    %c0_2 = arith.constant 0 : index
    %1 = vector.load %arg2[%c0_1, %c0_2] : memref<128x256xbf16, #tpu.memory_space<vmem>>, vector<128x256xbf16>
    %cst = arith.constant dense<0.000000e+00> : vector<128x256xf32>
    %2 = tpu.matmul %0, %1, %cst {dimension_numbers = #tpu.dot_dimension_numbers<[1], [0], [0], [1], [0, 0, 1, 1], [], []>} : vector<128x128xbf16>, vector<128x256xbf16>, vector<128x256xf32> -> vector<128x256xf32>
    %c0_3 = arith.constant 0 : index
    %c0_4 = arith.constant 0 : index
    %3 = vector.load %arg3[%c0_3, %c0_4] : memref<1x256xf32, #tpu.memory_space<vmem>>, vector<1x256xf32>
    %4 = vector.broadcast %3 : vector<1x256xf32> to vector<128x256xf32>
    %5 = arith.addf %2, %4 : vector<128x256xf32>
    %6 = arith.truncf %5 : vector<128x256xf32> to vector<128x256xbf16>
    %c0_5 = arith.constant 0 : index
    %c0_6 = arith.constant 0 : index
    %7 = vector.load %arg4[%c0_5, %c0_6] : memref<128x256xbf16, #tpu.memory_space<vmem>>, vector<128x256xbf16>
    tpu.vector_store %arg4[%c0_5, %c0_6], %6 {strides = array<i32>} : memref<128x256xbf16, #tpu.memory_space<vmem>>, vector<128x256xbf16>,
    return
  }
  func.func @transform_0(%arg0: i32) -> (i32, i32) {
    %c0_i32 = arith.constant 0 : i32
    %c0_i32_0 = arith.constant 0 : i32
    return %arg0, %c0_i32 : i32, i32
  }
  func.func @transform_1(%arg0: i32) -> (i32, i32) {
    %c0_i32 = arith.constant 0 : i32
    %c0_i32_0 = arith.constant 0 : i32
    %c0_i32_1 = arith.constant 0 : i32
    return %c0_i32, %c0_i32_0 : i32, i32
  }
  func.func @transform_2(%arg0: i32) -> (i32, i32) {
    %c0_i32 = arith.constant 0 : i32
    %c0_i32_0 = arith.constant 0 : i32
    %c0_i32_1 = arith.constant 0 : i32
    return %c0_i32, %c0_i32_0 : i32, i32
  }
  func.func @transform_3(%arg0: i32) -> (i32, i32) {
    %c0_i32 = arith.constant 0 : i32
    %c0_i32_0 = arith.constant 0 : i32
    return %arg0, %c0_i32 : i32, i32
  }
}

</mosaic_0001>

<llo_original>
// kernel: tpu_custom_call.1
$region0: #{tpu_custom_call.1}
  #allocation0 [shape = 'u32[]', space=smem, size = 0x4, offset = 0x4, fixed_abs, tag = 'smem constant byte address 0x4 - core index']
  #allocation1 [shape = 'u32[144,128]{1,0:T(1,128)}', space=vmem, size = 0x12000, scoped, tag = 'internal scratch']
  %s0 = inlined_call_operand.hbm [shape: bf16[256,128], index: 0, kind: input, shape index: {}]
  %s1 = inlined_call_operand.hbm [shape: bf16[128,256], index: 1, kind: input, shape index: {}]
  %s2 = inlined_call_operand.vmem [shape: f32[1,256], index: 2, kind: input, shape index: {}]
  %s3 = inlined_call_operand.hbm [shape: bf16[256,256], index: 3, kind: output, shape index: {}]
  %s4 = sld [smem:[#allocation0]]
  $region53: #{tpu_custom_call.1} parent=0
    _
  %s6 = ssub.s32 1, %s4
  %s7 = scalar_select 0, %s6, %s4
  $region1: #{tpu_custom_call.1} parent=0
    #allocation2 [shape = 'u8[65536]{0}', space=vmem, size = 0x10000, scoped, tag = 'input window, operand 0']
    #allocation3 [shape = 's32[2]{0}', space=sflag, size = 0x8, scoped, tag = 'scoped memory for tpu_custom_call.1']
    #allocation4 [shape = 's32[2]{0}', space=sflag, size = 0x8, scoped, tag = 'scoped memory for tpu_custom_call.1']
    #allocation5 [shape = 'u8[65536]{0}', space=vmem, size = 0x10000, scoped, tag = 'input window, operand 1, single buffered']
    #allocation6 [shape = 's32[1]{0}', space=sflag, size = 0x4, scoped, tag = 'scoped memory for tpu_custom_call.1']
    #allocation7 [shape = 'u8[131072]{0}', space=vmem, size = 0x20000, scoped, tag = 'output window, operand 0']
    %8 = vsyncpa [#allocation3], 0
    %s9 = scalar_lea.sflag [#allocation3], 1
    %10 = vsyncpa %s9, 0
    %11 = vsyncpa [#allocation6], 0
    %12 = vsyncpa [#allocation4], 0
    %s13 = scalar_lea.sflag [#allocation4], 1
    %14 = vsyncpa %s13, 0
    loop: start=0, step=1, limit=4
    $region2: #{tpu_custom_call.1} parent=1 // loop_pre_header
      _
    $region3: #{tpu_custom_call.1} parent=1 // loop_header
      %s16 = sphi 0, %s20
      %p17 = scmp.ge.s32.totalorder %s16, 4
      %s26 = sphi 0, %s28
      %s29 = sphi 0, %s26
      %s30 = sphi 0, %s29
      %s46 = sphi 0, %s30
      %s50 = sphi 0, %s50
      %s52 = sphi 0, %s50
      %s53 = sphi 0, %s52
      %s67 = sphi 0, %s53
      %s71 = sphi 0, %s71
      %s73 = sphi 0, %s71
      %s74 = sphi 0, %s73
      %s88 = sphi 0, %s74
      %s94 = sphi 0, %s96
      %s97 = sphi 0, %s94
      %s98 = sphi 0, %s97
      %s114 = sphi 0, %s98
    $region4: #{tpu_custom_call.1} parent=1 // loop_header_branch
      %19 = sbr.rel (%p17) target = $region8
    $region5: #{tpu_custom_call.1} parent=1 // loop_body
      %s21 = ssub.s32 %s16, 1
      %s22 = ssub.s32 %s16, 2
      %s23 = sadd.s32 %s16, 1
      %s24 = ssub.s32 %s16, %s23
      %p25 = scmp.eq.s32.totalorder %s24, 0
      %s27 = sadd.s32 %s26, 1
      %s28 = scalar_select %p25, %s26, %s27
      %p31 = pneg %p25
      %p32 = scmp.eq.s32.totalorder %s16, 1
      %p33 = por %p31, %p32
      %p34 = scmp.ne.s32.totalorder %s26, %s29
      %p35 = scmp.eq.s32.totalorder %s16, 0
      %p36 = por %p34, %p35
      %p37 = scmp.ne.s32.totalorder %s26, %s29
      %p38 = scmp.eq.s32.totalorder %s21, 1
      %p39 = por %p37, %p38
      %p40 = scmp.ne.s32.totalorder %s29, %s30
      %p41 = scmp.eq.s32.totalorder %s21, 0
      %p42 = por %p40, %p41
      %p43 = scmp.ne.s32.totalorder %s29, %s30
      %p44 = scmp.eq.s32.totalorder %s22, 1
      %p45 = por %p43, %p44
      %p47 = scmp.ne.s32.totalorder %s30, %s46
      %p48 = scmp.eq.s32.totalorder %s22, 0
      %p49 = por %p47, %p48
      %s51 = sadd.s32 %s50, 1
      %p54 = scmp.eq.s32.totalorder %s16, 1
      %p55 = scmp.ne.s32.totalorder %s50, %s52
      %p56 = scmp.eq.s32.totalorder %s16, 0
      %p57 = por %p55, %p56
      %p58 = scmp.ne.s32.totalorder %s50, %s52
      %p59 = scmp.eq.s32.totalorder %s21, 1
      %p60 = por %p58, %p59
      %p61 = scmp.ne.s32.totalorder %s52, %s53
      %p62 = scmp.eq.s32.totalorder %s21, 0
      %p63 = por %p61, %p62
      %p64 = scmp.ne.s32.totalorder %s52, %s53
      %p65 = scmp.eq.s32.totalorder %s22, 1
      %p66 = por %p64, %p65
      %p68 = scmp.ne.s32.totalorder %s53, %s67
      %p69 = scmp.eq.s32.totalorder %s22, 0
      %p70 = por %p68, %p69
      %s72 = sadd.s32 %s71, 1
      %p75 = scmp.eq.s32.totalorder %s16, 1
      %p76 = scmp.ne.s32.totalorder %s71, %s73
      %p77 = scmp.eq.s32.totalorder %s16, 0
      %p78 = por %p76, %p77
      %p79 = scmp.ne.s32.totalorder %s71, %s73
      %p80 = scmp.eq.s32.totalorder %s21, 1
      %p81 = por %p79, %p80
      %p82 = scmp.ne.s32.totalorder %s73, %s74
      %p83 = scmp.eq.s32.totalorder %s21, 0
      %p84 = por %p82, %p83
      %p85 = scmp.ne.s32.totalorder %s73, %s74
      %p86 = scmp.eq.s32.totalorder %s22, 1
      %p87 = por %p85, %p86
      %p89 = scmp.ne.s32.totalorder %s74, %s88
      %p90 = scmp.eq.s32.totalorder %s22, 0
      %p91 = por %p89, %p90
      %s92 = ssub.s32 %s16, %s23
      %p93 = scmp.eq.s32.totalorder %s92, 0
      %s95 = sadd.s32 %s94, 1
      %s96 = scalar_select %p93, %s94, %s95
      %p99 = pneg %p93
      %p100 = scmp.eq.s32.totalorder %s16, 1
      %p101 = por %p99, %p100
      %p102 = scmp.ne.s32.totalorder %s94, %s97
      %p103 = scmp.eq.s32.totalorder %s16, 0
      %p104 = por %p102, %p103
      %p105 = scmp.ne.s32.totalorder %s94, %s97
      %p106 = scmp.eq.s32.totalorder %s21, 1
      %p107 = por %p105, %p106
      %p108 = scmp.ne.s32.totalorder %s97, %s98
      %p109 = scmp.eq.s32.totalorder %s21, 0
      %p110 = por %p108, %p109
      %p111 = scmp.ne.s32.totalorder %s97, %s98
      %p112 = scmp.eq.s32.totalorder %s22, 1
      %p113 = por %p111, %p112
      %p115 = scmp.ne.s32.totalorder %s98, %s114
      %p116 = scmp.eq.s32.totalorder %s22, 0
      %p117 = por %p115, %p116
      %p118 = scmp.le.s32.totalorder 1, %s16
      %p119 = scmp.lt.s32.totalorder %s16, 3
      %p120 = pnand %p118, %p119
      %p121 = pneg %p120
      // Predicated region
      $region9: #{tpu_custom_call.1} parent=5 // pred_check
        _
      $region10: #{tpu_custom_call.1} parent=5 // pred_check_branch
        %123 = sbr.rel (%p120) target = $region12
      $region11: #{tpu_custom_call.1} parent=5 // pred_region
        %s124 = ssub.s32 %s16, 1
        // Predicated region
        $region13: #{tpu_custom_call.1} parent=11 // pred_check
          %p125 = pneg %p63
        $region14: #{tpu_custom_call.1} parent=11 // pred_check_branch
          %127 = sbr.rel (%p125) target = $region16
        $region15: #{tpu_custom_call.1} parent=11 // pred_region
          %s129 = ssub.s32 2048, 2048
          %130 = vsyncadd [#allocation6], %s129
          %s131 = sshll.u32 [#allocation5], 4
          %s132 = int_to_ptr.vmem [resolvable:$true] %s131
          %137 = dma.hbm_to_vmem [thread:$0]  %s1, 2048, %s132, [#allocation6], 128, 128, 8
        $region16: #{tpu_custom_call.1} parent=11 // pred_fallthru
          _
        // Predicated region
        $region17: #{tpu_custom_call.1} parent=11 // pred_check
          %p138 = pneg %p84
        $region18: #{tpu_custom_call.1} parent=11 // pred_check_branch
          %140 = sbr.rel (%p138) target = $region20
        $region19: #{tpu_custom_call.1} parent=11 // pred_region
          _
        $region20: #{tpu_custom_call.1} parent=11 // pred_fallthru
          _
      $region12: #{tpu_custom_call.1} parent=5 // pred_fallthru
        _
      %p141 = scmp.lt.s32.totalorder %s16, 2
      // Predicated region
      $region21: #{tpu_custom_call.1} parent=5 // pred_check
        %p142 = pneg %p141
      $region22: #{tpu_custom_call.1} parent=5 // pred_check_branch
        %144 = sbr.rel (%p142) target = $region24
      $region23: #{tpu_custom_call.1} parent=5 // pred_region
        // Predicated region
        $region25: #{tpu_custom_call.1} parent=23 // pred_check
          %p145 = pneg %p36
        $region26: #{tpu_custom_call.1} parent=23 // pred_check_branch
          %147 = sbr.rel (%p145) target = $region28
        $region27: #{tpu_custom_call.1} parent=23 // pred_region
          %s148 = sand.u32 %s26, 1
          %s149 = scalar_lea.sflag [#allocation3], %s148
          %s150 = sand.u32 %s26, 1
          %s151 = smul.addr %s150, 64
          %s152 = scalar_lea.vmem [#allocation2], %s151
          %s153 = smul.u32 16, %s16
          %s155 = ssub.s32 1024, 1024
          %156 = vsyncadd %s149, %s155
          %s157 = smul.addr %s153, 64
          %s158 = scalar_lea.hbm %s0, %s157
          %s159 = sshll.u32 %s152, 4
          %s160 = int_to_ptr.vmem [resolvable:$true] %s159
          %165 = dma.hbm_to_vmem [thread:$0]  %s158, 1024, %s160, %s149, 64, 64, 4
        $region28: #{tpu_custom_call.1} parent=23 // pred_fallthru
          _
      $region24: #{tpu_custom_call.1} parent=5 // pred_fallthru
        _
      %p166 = scmp.le.s32.totalorder 1, %s16
      %p167 = scmp.lt.s32.totalorder %s16, 3
      %p168 = pnand %p166, %p167
      %p169 = pneg %p168
      // Predicated region
      $region29: #{tpu_custom_call.1} parent=5 // pred_check
        _
      $region30: #{tpu_custom_call.1} parent=5 // pred_check_branch
        %171 = sbr.rel (%p168) target = $region32
      $region31: #{tpu_custom_call.1} parent=5 // pred_region
        %s172 = ssub.s32 %s16, 1
        %s173 = sand.u32 %s29, 1
        %s174 = scalar_lea.sflag [#allocation3], %s173
        %s175 = sand.u32 %s29, 1
        %s176 = smul.addr %s175, 64
        %s177 = scalar_lea.vmem [#allocation2], %s176
        // Predicated region
        $region33: #{tpu_custom_call.1} parent=31 // pred_check
          %p178 = pneg %p42
        $region34: #{tpu_custom_call.1} parent=31 // pred_check_branch
          %180 = sbr.rel (%p178) target = $region36
        $region35: #{tpu_custom_call.1} parent=31 // pred_region
          %181 = dma.done %s174, 1024
        $region36: #{tpu_custom_call.1} parent=31 // pred_fallthru
          _
        // Predicated region
        $region37: #{tpu_custom_call.1} parent=31 // pred_check
          %p182 = pneg %p63
        $region38: #{tpu_custom_call.1} parent=31 // pred_check_branch
          %184 = sbr.rel (%p182) target = $region40
        $region39: #{tpu_custom_call.1} parent=31 // pred_region
          %185 = dma.done [#allocation6], 2048
        $region40: #{tpu_custom_call.1} parent=31 // pred_fallthru
          _
        %s186 = sand.u32 %s29, 1
        %s187 = scalar_lea.sflag [#allocation3], %s186
        %s188 = sand.u32 %s29, 1
        %s189 = smul.addr %s188, 64
        %s190 = scalar_lea.vmem [#allocation2], %s189
        %p191 = pneg %p42
        %p192 = pneg %p39
        %p193 = pneg %p63
        %p194 = pneg %p60
        %p195 = pneg %p84
        %p196 = pneg %p81
        %p197 = pneg %p110
        %p198 = pneg %p107
        %s199 = sand.u32 %s97, 1
        %s200 = scalar_lea.sflag [#allocation4], %s199
        %s201 = sand.u32 %s97, 1
        %s202 = smul.addr %s201, 128
        %s203 = scalar_lea.vmem [#allocation7], %s202
        %s204 = smul.u32 16, %s21
        %s205 = smul.u32 16, %s21
        %v207 = vld [vmem:[%s177] sm:$0xf]
        %v208 = vld [vmem:[%s177 + $0x4] sm:$0xf]
        %v209 = vld [vmem:[%s177 + $0x8] sm:$0xf]
        %v210 = vld [vmem:[%s177 + $0xc] sm:$0xf]
        %v211 = vld [vmem:[%s177 + $0x10] sm:$0xf]
        %v212 = vld [vmem:[%s177 + $0x14] sm:$0xf]
        %v213 = vld [vmem:[%s177 + $0x18] sm:$0xf]
        %v214 = vld [vmem:[%s177 + $0x1c] sm:$0xf]
        %v215 = vld [vmem:[%s177 + $0x20] sm:$0xf]
        %v216 = vld [vmem:[%s177 + $0x24] sm:$0xf]
        %v217 = vld [vmem:[%s177 + $0x28] sm:$0xf]
        %v218 = vld [vmem:[%s177 + $0x2c] sm:$0xf]
        %v219 = vld [vmem:[%s177 + $0x30] sm:$0xf]
        %v220 = vld [vmem:[%s177 + $0x34] sm:$0xf]
        %v221 = vld [vmem:[%s177 + $0x38] sm:$0xf]
        %v222 = vld [vmem:[%s177 + $0x3c] sm:$0xf]
        %v223 = vld [vmem:[#allocation5] sm:$0xff]
        %v224 = vld [vmem:[#allocation5 + $0x8] sm:$0xff]
        %v225 = vld [vmem:[#allocation5 + $0x10] sm:$0xff]
        %v226 = vld [vmem:[#allocation5 + $0x18] sm:$0xff]
        %v227 = vld [vmem:[#allocation5 + $0x20] sm:$0xff]
        %v228 = vld [vmem:[#allocation5 + $0x28] sm:$0xff]
        %v229 = vld [vmem:[#allocation5 + $0x30] sm:$0xff]
        %v230 = vld [vmem:[#allocation5 + $0x38] sm:$0xff]
        %v231 = vld [vmem:[#allocation5 + $0x40] sm:$0xff]
        %v232 = vld [vmem:[#allocation5 + $0x48] sm:$0xff]
        %v233 = vld [vmem:[#allocation5 + $0x50] sm:$0xff]
        %v234 = vld [vmem:[#allocation5 + $0x58] sm:$0xff]
        %v235 = vld [vmem:[#allocation5 + $0x60] sm:$0xff]
        %v236 = vld [vmem:[#allocation5 + $0x68] sm:$0xff]
        %v237 = vld [vmem:[#allocation5 + $0x70] sm:$0xff]
        %v238 = vld [vmem:[#allocation5 + $0x78] sm:$0xff]
        %v239 = vld [vmem:[%s2] sm:$0x3]
        %v241 = vlaneseq
        %v242 = vshrl.u32 %v241, 7
        %v243 = vsub.s32 0, %v242
        %v244 = vrot.slane %v239, %v243
        %v245 = vlaneseq
        %v246 = vshrl.u32 %v245, 7
        %v247 = vsub.s32 1, %v246
        %v248 = vrot.slane %v239, %v247
        %v267 = vunpack.c.l.b16 %v207
        %v268 = vunpack.c.l.b16 %v208
        %v269 = vunpack.c.l.b16 %v209
        %v270 = vunpack.c.l.b16 %v210
        %v271 = vunpack.c.l.b16 %v211
        %v272 = vunpack.c.l.b16 %v212
        %v273 = vunpack.c.l.b16 %v213
        %v274 = vunpack.c.l.b16 %v214
        %v275 = vunpack.c.l.b16 %v215
        %v276 = vunpack.c.l.b16 %v216
        %v277 = vunpack.c.l.b16 %v217
        %v278 = vunpack.c.l.b16 %v218
        %v279 = vunpack.c.l.b16 %v219
        %v280 = vunpack.c.l.b16 %v220
        %v281 = vunpack.c.l.b16 %v221
        %v282 = vunpack.c.l.b16 %v222
        %v283 = vpack.c.b16 %v268, %v267
        %v284 = vpack.c.b16 %v270, %v269
        %v285 = vpack.c.b16 %v272, %v271
        %v286 = vpack.c.b16 %v274, %v273
        %v287 = vpack.c.b16 %v276, %v275
        %v288 = vpack.c.b16 %v278, %v277
        %v289 = vpack.c.b16 %v280, %v279
        %v290 = vpack.c.b16 %v282, %v281
        %v315 = vunpack.c.l.b16 %v223
        %v316 = vunpack.c.h.b16 %v223
        %v317 = vunpack.c.l.b16 %v224
        %v318 = vunpack.c.h.b16 %v224
        %v319 = vunpack.c.l.b16 %v225
        %v320 = vunpack.c.h.b16 %v225
        %v321 = vunpack.c.l.b16 %v226
        %v322 = vunpack.c.h.b16 %v226
        %v323 = vunpack.c.l.b16 %v227
        %v324 = vunpack.c.h.b16 %v227
        %v325 = vunpack.c.l.b16 %v228
        %v326 = vunpack.c.h.b16 %v228
        %v327 = vunpack.c.l.b16 %v229
        %v328 = vunpack.c.h.b16 %v229
        %v329 = vunpack.c.l.b16 %v230
        %v330 = vunpack.c.h.b16 %v230
        %v331 = vunpack.c.l.b16 %v231
        %v332 = vunpack.c.h.b16 %v231
        %v333 = vunpack.c.l.b16 %v232
        %v334 = vunpack.c.h.b16 %v232
        %v335 = vunpack.c.l.b16 %v233
        %v336 = vunpack.c.h.b16 %v233
        %v337 = vunpack.c.l.b16 %v234
        %v338 = vunpack.c.h.b16 %v234
        %v339 = vunpack.c.l.b16 %v235
        %v340 = vunpack.c.h.b16 %v235
        %v341 = vunpack.c.l.b16 %v236
        %v342 = vunpack.c.h.b16 %v236
        %v343 = vunpack.c.l.b16 %v237
        %v344 = vunpack.c.h.b16 %v237
        %v345 = vunpack.c.l.b16 %v238
        %v346 = vunpack.c.h.b16 %v238
        %v347 = vpack.c.b16 %v317, %v315
        %v348 = vpack.c.b16 %v318, %v316
        %v349 = vpack.c.b16 %v321, %v319
        %v350 = vpack.c.b16 %v322, %v320
        %v351 = vpack.c.b16 %v325, %v323
        %v352 = vpack.c.b16 %v326, %v324
        %v353 = vpack.c.b16 %v329, %v327
        %v354 = vpack.c.b16 %v330, %v328
        %v355 = vpack.c.b16 %v333, %v331
        %v356 = vpack.c.b16 %v334, %v332
        %v357 = vpack.c.b16 %v337, %v335
        %v358 = vpack.c.b16 %v338, %v336
        %v359 = vpack.c.b16 %v341, %v339
        %v360 = vpack.c.b16 %v342, %v340
        %v361 = vpack.c.b16 %v345, %v343
        %v362 = vpack.c.b16 %v346, %v344
        %379 = vmatprep.subr.bf16.mxu0 %v362
        %380 = vmatpush1.bf16.msra.mxu0 %v361
        %381 = vmatprep.subr.bf16.mxu0 %v360
        %382 = vmatpush1.bf16.msra.mxu0 %v359
        %383 = vmatprep.subr.bf16.mxu0 %v358
        %384 = vmatpush1.bf16.msra.mxu0 %v357
        %385 = vmatprep.subr.bf16.mxu0 %v356
        %386 = vmatpush1.bf16.msra.mxu0 %v355
        %387 = vmatprep.subr.bf16.mxu0 %v354
        %388 = vmatpush1.bf16.msra.mxu0 %v353
        %389 = vmatprep.subr.bf16.mxu0 %v352
        %390 = vmatpush1.bf16.msra.mxu0 %v351
        %391 = vmatprep.subr.bf16.mxu0 %v350
        %392 = vmatpush1.bf16.msra.mxu0 %v349
        %393 = vmatprep.subr.bf16.mxu0 %v348
        %394 = vmatpush1.bf16.msra.mxu0 %v347
        %395 = vmatprep.subr.bf16.mxu0 0
        %396 = vmatpush2.bf16.msra.mxu0 0
        %397 = vmatprep.subr.bf16.mxu0 0
        %398 = vmatpush2.bf16.msra.mxu0 0
        %399 = vmatprep.subr.bf16.mxu0 0
        %400 = vmatpush2.bf16.msra.mxu0 0
        %401 = vmatprep.subr.bf16.mxu0 0
        %402 = vmatpush2.bf16.msra.mxu0 0
        %403 = vmatprep.subr.bf16.mxu0 0
        %404 = vmatpush2.bf16.msra.mxu0 0
        %405 = vmatprep.subr.bf16.mxu0 0
        %406 = vmatpush2.bf16.msra.mxu0 0
        %407 = vmatprep.subr.bf16.mxu0 0
        %408 = vmatpush2.bf16.msra.mxu0 0
        %409 = vmatprep.subr.bf16.mxu0 0
        %410 = vmatpush2.bf16.msra.mxu0 0
        %411 = vmatprep.mubr.bf16.mxu0 0
        %412 = vmatmul.mubr.bf16.gmra.mxu0 %v283
        %v413 = vpop.f32.mrf.mxu0
        %v414 = vadd.f32 %v244, %v413
        %v415 = vpop.f32.mrf.mxu0
        %v416 = vadd.f32 %v248, %v415
        %v417 = vpop.f32.mrf.mxu0
        %v418 = vadd.f32 %v244, %v417
        %v419 = vpop.f32.mrf.mxu0
        %v420 = vadd.f32 %v248, %v419
        %421 = vmatprep.mubr.bf16.mxu0 0
        %422 = vmatmul.mubr.bf16.gmra.mxu0 %v284
        %v423 = vpop.f32.mrf.mxu0
        %v424 = vadd.f32 %v244, %v423
        %v425 = vpop.f32.mrf.mxu0
        %v426 = vadd.f32 %v248, %v425
        %v427 = vpop.f32.mrf.mxu0
        %v428 = vadd.f32 %v244, %v427
        %v429 = vpop.f32.mrf.mxu0
        %v430 = vadd.f32 %v248, %v429
        %431 = vmatprep.mubr.bf16.mxu0 0
        %432 = vmatmul.mubr.bf16.gmra.mxu0 %v285
        %v433 = vpop.f32.mrf.mxu0
        %v434 = vadd.f32 %v244, %v433
        %v435 = vpop.f32.mrf.mxu0
        %v436 = vadd.f32 %v248, %v435
        %v437 = vpop.f32.mrf.mxu0
        %v438 = vadd.f32 %v244, %v437
        %v439 = vpop.f32.mrf.mxu0
        %v440 = vadd.f32 %v248, %v439
        %441 = vmatprep.mubr.bf16.mxu0 0
        %442 = vmatmul.mubr.bf16.gmra.mxu0 %v286
        %v443 = vpop.f32.mrf.mxu0
        %v444 = vadd.f32 %v244, %v443
        %v445 = vpop.f32.mrf.mxu0
        %v446 = vadd.f32 %v248, %v445
        %v447 = vpop.f32.mrf.mxu0
        %v448 = vadd.f32 %v244, %v447
        %v449 = vpop.f32.mrf.mxu0
        %v450 = vadd.f32 %v248, %v449
        %451 = vmatprep.mubr.bf16.mxu0 0
        %452 = vmatmul.mubr.bf16.gmra.mxu0 %v287
        %v453 = vpop.f32.mrf.mxu0
        %v454 = vadd.f32 %v244, %v453
        %v455 = vpop.f32.mrf.mxu0
        %v456 = vadd.f32 %v248, %v455
        %v457 = vpop.f32.mrf.mxu0
        %v458 = vadd.f32 %v244, %v457
        %v459 = vpop.f32.mrf.mxu0
        %v460 = vadd.f32 %v248, %v459
        %461 = vmatprep.mubr.bf16.mxu0 0
        %462 = vmatmul.mubr.bf16.gmra.mxu0 %v288
        %v463 = vpop.f32.mrf.mxu0
        %v464 = vadd.f32 %v244, %v463
        %v465 = vpop.f32.mrf.mxu0
        %v466 = vadd.f32 %v248, %v465
        %v467 = vpop.f32.mrf.mxu0
        %v468 = vadd.f32 %v244, %v467
        %v469 = vpop.f32.mrf.mxu0
        %v470 = vadd.f32 %v248, %v469
        %471 = vmatprep.mubr.bf16.mxu0 0
        %472 = vmatmul.mubr.bf16.gmra.mxu0 %v289
        %v473 = vpop.f32.mrf.mxu0
        %v474 = vadd.f32 %v244, %v473
        %v475 = vpop.f32.mrf.mxu0
        %v476 = vadd.f32 %v248, %v475
        %v477 = vpop.f32.mrf.mxu0
        %v478 = vadd.f32 %v244, %v477
        %v479 = vpop.f32.mrf.mxu0
        %v480 = vadd.f32 %v248, %v479
        %481 = vmatprep.mubr.bf16.mxu0 0
        %482 = vmatmul.mubr.bf16.gmra.mxu0 %v290
        %v483 = vpop.f32.mrf.mxu0
        %v484 = vadd.f32 %v244, %v483
        %v485 = vpop.f32.mrf.mxu0
        %v486 = vadd.f32 %v248, %v485
        %v487 = vpop.f32.mrf.mxu0
        %v488 = vadd.f32 %v244, %v487
        %v489 = vpop.f32.mrf.mxu0
        %v490 = vadd.f32 %v248, %v489
        %491 = vdwg.mxu0
        %v492 = vpack.c.bf16 %v418, %v414
        %v493 = vpack.c.bf16 %v420, %v416
        %v494 = vpack.c.bf16 %v428, %v424
        %v495 = vpack.c.bf16 %v430, %v426
        %v496 = vpack.c.bf16 %v438, %v434
        %v497 = vpack.c.bf16 %v440, %v436
        %v498 = vpack.c.bf16 %v448, %v444
        %v499 = vpack.c.bf16 %v450, %v446
        %v500 = vpack.c.bf16 %v458, %v454
        %v501 = vpack.c.bf16 %v460, %v456
        %v502 = vpack.c.bf16 %v468, %v464
        %v503 = vpack.c.bf16 %v470, %v466
        %v504 = vpack.c.bf16 %v478, %v474
        %v505 = vpack.c.bf16 %v480, %v476
        %v506 = vpack.c.bf16 %v488, %v484
        %v507 = vpack.c.bf16 %v490, %v486
        %v524 = vunpack.c.l.b16 %v492
        %v525 = vunpack.c.l.b16 %v493
        %v526 = vunpack.c.h.b16 %v492
        %v527 = vunpack.c.h.b16 %v493
        %v528 = vunpack.c.l.b16 %v494
        %v529 = vunpack.c.l.b16 %v495
        %v530 = vunpack.c.h.b16 %v494
        %v531 = vunpack.c.h.b16 %v495
        %v532 = vunpack.c.l.b16 %v496
        %v533 = vunpack.c.l.b16 %v497
        %v534 = vunpack.c.h.b16 %v496
        %v535 = vunpack.c.h.b16 %v497
        %v536 = vunpack.c.l.b16 %v498
        %v537 = vunpack.c.l.b16 %v499
        %v538 = vunpack.c.h.b16 %v498
        %v539 = vunpack.c.h.b16 %v499
        %v540 = vunpack.c.l.b16 %v500
        %v541 = vunpack.c.l.b16 %v501
        %v542 = vunpack.c.h.b16 %v500
        %v543 = vunpack.c.h.b16 %v501
        %v544 = vunpack.c.l.b16 %v502
        %v545 = vunpack.c.l.b16 %v503
        %v546 = vunpack.c.h.b16 %v502
        %v547 = vunpack.c.h.b16 %v503
        %v548 = vunpack.c.l.b16 %v504
        %v549 = vunpack.c.l.b16 %v505
        %v550 = vunpack.c.h.b16 %v504
        %v551 = vunpack.c.h.b16 %v505
        %v552 = vunpack.c.l.b16 %v506
        %v553 = vunpack.c.l.b16 %v507
        %v554 = vunpack.c.h.b16 %v506
        %v555 = vunpack.c.h.b16 %v507
        %v556 = vpack.c.b16 %v525, %v524
        %v557 = vpack.c.b16 %v527, %v526
        %v558 = vpack.c.b16 %v529, %v528
        %v559 = vpack.c.b16 %v531, %v530
        %v560 = vpack.c.b16 %v533, %v532
        %v561 = vpack.c.b16 %v535, %v534
        %v562 = vpack.c.b16 %v537, %v536
        %v563 = vpack.c.b16 %v539, %v538
        %v564 = vpack.c.b16 %v541, %v540
        %v565 = vpack.c.b16 %v543, %v542
        %v566 = vpack.c.b16 %v545, %v544
        %v567 = vpack.c.b16 %v547, %v546
        %v568 = vpack.c.b16 %v549, %v548
        %v569 = vpack.c.b16 %v551, %v550
        %v570 = vpack.c.b16 %v553, %v552
        %v571 = vpack.c.b16 %v555, %v554
        %588 = vst [vmem:[%s203] sm:$0xff] %v556
        %589 = vst [vmem:[%s203 + $0x8] sm:$0xff] %v557
        %590 = vst [vmem:[%s203 + $0x10] sm:$0xff] %v558
        %591 = vst [vmem:[%s203 + $0x18] sm:$0xff] %v559
        %592 = vst [vmem:[%s203 + $0x20] sm:$0xff] %v560
        %593 = vst [vmem:[%s203 + $0x28] sm:$0xff] %v561
        %594 = vst [vmem:[%s203 + $0x30] sm:$0xff] %v562
        %595 = vst [vmem:[%s203 + $0x38] sm:$0xff] %v563
        %596 = vst [vmem:[%s203 + $0x40] sm:$0xff] %v564
        %597 = vst [vmem:[%s203 + $0x48] sm:$0xff] %v565
        %598 = vst [vmem:[%s203 + $0x50] sm:$0xff] %v566
        %599 = vst [vmem:[%s203 + $0x58] sm:$0xff] %v567
        %600 = vst [vmem:[%s203 + $0x60] sm:$0xff] %v568
        %601 = vst [vmem:[%s203 + $0x68] sm:$0xff] %v569
        %602 = vst [vmem:[%s203 + $0x70] sm:$0xff] %v570
        %603 = vst [vmem:[%s203 + $0x78] sm:$0xff] %v571
        %s604 = sand.u32 %s97, 1
        %s605 = scalar_lea.sflag [#allocation4], %s604
        %s606 = sand.u32 %s97, 1
        %s607 = smul.addr %s606, 128
        %s608 = scalar_lea.vmem [#allocation7], %s607
        // Predicated region
        $region41: #{tpu_custom_call.1} parent=31 // pred_check
          %p609 = pneg %p107
        $region42: #{tpu_custom_call.1} parent=31 // pred_check_branch
          %611 = sbr.rel (%p609) target = $region44
        $region43: #{tpu_custom_call.1} parent=31 // pred_region
          %s612 = smul.u32 16, %s21
          %s614 = ssub.s32 2048, 2048
          %615 = vsyncadd %s605, %s614
          %s616 = smul.addr %s612, 2
          %s617 = smul.addr %s616, 64
          %s618 = scalar_lea.hbm %s3, %s617
          %s619 = sshll.u32 %s608, 4
          %s620 = int_to_ptr.vmem [resolvable:$true] %s619
          %625 = dma.vmem_to_hbm [thread:$0]  %s620, 2048, %s618, %s605, 128, 128, 8
        $region44: #{tpu_custom_call.1} parent=31 // pred_fallthru
          _
      $region32: #{tpu_custom_call.1} parent=5 // pred_fallthru
        _
      %p626 = scmp.le.s32.totalorder 2, %s16
      // Predicated region
      $region45: #{tpu_custom_call.1} parent=5 // pred_check
        %p627 = pneg %p626
      $region46: #{tpu_custom_call.1} parent=5 // pred_check_branch
        %629 = sbr.rel (%p627) target = $region48
      $region47: #{tpu_custom_call.1} parent=5 // pred_region
        %s630 = ssub.s32 %s16, 2
        // Predicated region
        $region49: #{tpu_custom_call.1} parent=47 // pred_check
          %p631 = pneg %p113
        $region50: #{tpu_custom_call.1} parent=47 // pred_check_branch
          %633 = sbr.rel (%p631) target = $region52
        $region51: #{tpu_custom_call.1} parent=47 // pred_region
          %s634 = sand.u32 %s98, 1
          %s635 = scalar_lea.sflag [#allocation4], %s634
          %s636 = sand.u32 %s98, 1
          %s637 = smul.addr %s636, 128
          %s638 = scalar_lea.vmem [#allocation7], %s637
          %639 = dma.done %s635, 2048
        $region52: #{tpu_custom_call.1} parent=47 // pred_fallthru
          _
      $region48: #{tpu_custom_call.1} parent=5 // pred_fallthru
        _
    $region6: #{tpu_custom_call.1} parent=1 // loop_footer
      %s20 = sadd.s32 1, %s16
    $region7: #{tpu_custom_call.1} parent=1 // loop_footer_branch
      %15 = sbr.rel target = $region3
    $region8: #{tpu_custom_call.1} parent=1 // loop_exit
      _
    %640 = vsyncpa [#allocation3], 1
    %s641 = scalar_lea.sflag [#allocation3], 1
    %642 = vsyncpa %s641, 1
    %643 = vsyncpa [#allocation6], 1
    %644 = vsyncpa [#allocation4], 1
    %s645 = scalar_lea.sflag [#allocation4], 1
    %646 = vsyncpa %s645, 1

</llo_original>
